<compile_context>
chip_gen: v7x
topology: tpu7x:2x2x1
jax: 0.10.0
libtpu: 0.0.40
codegen_flags: <defaults>
</compile_context>

<pallas_src>
import jax
import jax.numpy as jnp
from jax.experimental import pallas as pl
from jax.experimental.pallas import tpu as pltpu


def _copy_kernel(x_ref, o_ref):
    # Identity copy of the current (sub_tile, lane_tile) block.
    o_ref[...] = x_ref[...]


def _pick_tiles(N, chw, itemsize):
    """Choose (sublane_tile, lane_tile) so blocks are big, lane-dense, and
    comfortably inside the smallest scoped-VMEM default (v5e: 16 MiB; budget
    ~= 4 x block_bytes for in+out, each double-buffered)."""
    # Sublane (second-to-last) tile: full dim if small, else a multiple of 8
    # capped at 256 so footprint does not scale with batch size.
    if N <= 8:
        sub_tile = N
    else:
        sub_tile = min(256, (N // 8) * 8)

    # Lane (last) tile: full dim if < 128, else the largest multiple of 128
    # that (a) fits a ~2 MiB per-block budget, (b) is <= 8192 lanes, and
    # (c) does not exceed the 128-aligned part of chw (ragged tail handled
    # by the cdiv grid).
    if chw < 128:
        lane_tile = chw
    else:
        block_budget_bytes = 2 * 1024 * 1024
        by_budget = (block_budget_bytes // (sub_tile * itemsize)) // 128 * 128
        by_budget = max(128, by_budget)
        lane_tile = min(8192, by_budget, (chw // 128) * 128)
    return sub_tile, lane_tile


def unflatten(x, N, C, H, W):
    """Pallas implementation of Unflatten: (N, C*H*W) -> (N, C, H, W)."""
    assert x.shape == (N, C * H * W), f"expected {(N, C*H*W)}, got {x.shape}"
    chw = C * H * W
    itemsize = jnp.dtype(x.dtype).itemsize

    sub_tile, lane_tile = _pick_tiles(N, chw, itemsize)
    grid = (pl.cdiv(N, sub_tile), pl.cdiv(chw, lane_tile))

    flat = pl.pallas_call(
        _copy_kernel,
        out_shape=jax.ShapeDtypeStruct((N, chw), x.dtype),
        grid_spec=pltpu.PrefetchScalarGridSpec(
            num_scalar_prefetch=0,
            grid=grid,
            in_specs=[pl.BlockSpec((sub_tile, lane_tile), lambda i, j: (i, j))],
            out_specs=pl.BlockSpec((sub_tile, lane_tile), lambda i, j: (i, j)),
        ),
        compiler_params=pltpu.CompilerParams(
            dimension_semantics=("parallel", "parallel"),
        ),
        cost_estimate=pl.CostEstimate(
            flops=0,
            transcendentals=0,
            bytes_accessed=2 * N * chw * itemsize,
        ),
    )(x)

    # Rank change is pure metadata glue (as in torch's .view).
    return flat.reshape(N, C, H, W)


if __name__ == "__main__":
    # Small shapes consistent with the module: N=2, C=4, H=16, W=16.
    N, C, H, W = 2, 4, 16, 16
    key = jax.random.PRNGKey(0)
    x = jax.random.normal(key, (N, C * H * W), dtype=jnp.float32)

    out = unflatten(x, N, C, H, W)
    out = jax.block_until_ready(out)

    # Verify against the reference semantics (plain reshape).
    ref = x.reshape(N, C, H, W)
    assert out.shape == (N, C, H, W)
    assert out.dtype == x.dtype
    assert jnp.array_equal(out, ref)

    print("KERNEL_OK")
</pallas_src>

<mosaic_0001>
module attributes {stable_mosaic.version = 11 : i64} {
  func.func @_copy_kernel(%arg0: i32, %arg1: i32, %arg2: memref<2x1024xf32, #tpu.memory_space<vmem>>, %arg3: memref<2x1024xf32, #tpu.memory_space<vmem>>) attributes {dimension_semantics = [#tpu.dimension_semantics<parallel>, #tpu.dimension_semantics<parallel>], iteration_bounds = array<i64: 1, 1>, scalar_prefetch = 0 : i64, scratch_operands = 0 : i64, tpu.core_type = #tpu.core_type<tc>, window_params = [{transform_indices = @transform_0, window_bounds = array<i64: 2, 1024>}, {transform_indices = @transform_1, window_bounds = array<i64: 2, 1024>}]} {
    %c0 = arith.constant 0 : index
    %c0_0 = arith.constant 0 : index
    %0 = vector.load %arg2[%c0, %c0_0] : memref<2x1024xf32, #tpu.memory_space<vmem>>, vector<2x1024xf32>
    %c0_1 = arith.constant 0 : index
    %c0_2 = arith.constant 0 : index
    %1 = vector.load %arg3[%c0_1, %c0_2] : memref<2x1024xf32, #tpu.memory_space<vmem>>, vector<2x1024xf32>
    tpu.vector_store %arg3[%c0_1, %c0_2], %0 {strides = array<i32>} : memref<2x1024xf32, #tpu.memory_space<vmem>>, vector<2x1024xf32>,
    return
  }
  func.func @transform_0(%arg0: i32, %arg1: i32) -> (i32, i32) {
    %c0_i32 = arith.constant 0 : i32
    return %arg0, %arg1 : i32, i32
  }
  func.func @transform_1(%arg0: i32, %arg1: i32) -> (i32, i32) {
    %c0_i32 = arith.constant 0 : i32
    return %arg0, %arg1 : i32, i32
  }
}

</mosaic_0001>

<llo_original>
// kernel: tpu_custom_call.1
$region0: #{tpu_custom_call.1}
  #allocation0 [shape = 'u32[]', space=smem, size = 0x4, offset = 0x4, fixed_abs, tag = 'smem constant byte address 0x4 - core index']
  #allocation1 [shape = 'u32[144,128]{1,0:T(1,128)}', space=vmem, size = 0x12000, scoped, tag = 'internal scratch']
  %s0 = inlined_call_operand.hbm [shape: f32[2,1024], index: 0, kind: input, shape index: {}]
  %s1 = inlined_call_operand.hbm [shape: f32[2,1024], index: 1, kind: output, shape index: {}]
  %s2 = sld [smem:[#allocation0]]
  $region18: #{tpu_custom_call.1} parent=0
    _
  %s4 = ssub.s32 1, %s2
  %s5 = scalar_select 0, %s4, %s2
  $region1: #{tpu_custom_call.1} parent=0
    #allocation2 [shape = 'u8[8192]{0}', space=vmem, size = 0x2000, scoped, tag = 'input window, operand 0, single buffered']
    #allocation3 [shape = 's32[1]{0}', space=sflag, size = 0x4, scoped, tag = 'scoped memory for tpu_custom_call.1']
    #allocation4 [shape = 's32[1]{0}', space=sflag, size = 0x4, scoped, tag = 'scoped memory for tpu_custom_call.1']
    #allocation5 [shape = 'u8[8192]{0}', space=vmem, size = 0x2000, scoped, tag = 'output window, operand 0, single buffered']
    %6 = vsyncpa [#allocation3], 0
    %7 = vsyncpa [#allocation4], 0
    // Predicated region
    $region2: #{tpu_custom_call.1} parent=1 // pred_check
      _
    $region3: #{tpu_custom_call.1} parent=1 // pred_check_branch
      %9 = sbr.rel (0) target = $region5
    $region4: #{tpu_custom_call.1} parent=1 // pred_region
      %s11 = ssub.s32 256, 256
      %12 = vsyncadd [#allocation3], %s11
      %s14 = sshll.u32 [#allocation2], 4
      %s15 = int_to_ptr.vmem [resolvable:$true] %s14
      %17 = dma.hbm_to_vmem [thread:$0]  %s0, 256, %s15, [#allocation3]
    $region5: #{tpu_custom_call.1} parent=1 // pred_fallthru
      _
    // Predicated region
    $region6: #{tpu_custom_call.1} parent=1 // pred_check
      _
    $region7: #{tpu_custom_call.1} parent=1 // pred_check_branch
      %19 = sbr.rel (0) target = $region9
    $region8: #{tpu_custom_call.1} parent=1 // pred_region
      %20 = dma.done [#allocation3], 256
    $region9: #{tpu_custom_call.1} parent=1 // pred_fallthru
      _
    %v21 = vld [vmem:[#allocation2] sm:$0xff]
    %v22 = vld [vmem:[#allocation2 + $0x8] sm:$0xff]
    %23 = vst [vmem:[#allocation5] sm:$0xff] %v21
    %24 = vst [vmem:[#allocation5 + $0x8] sm:$0xff] %v22
    // Predicated region
    $region10: #{tpu_custom_call.1} parent=1 // pred_check
      _
    $region11: #{tpu_custom_call.1} parent=1 // pred_check_branch
      %26 = sbr.rel (0) target = $region13
    $region12: #{tpu_custom_call.1} parent=1 // pred_region
      %s28 = ssub.s32 256, 256
      %29 = vsyncadd [#allocation4], %s28
      %s31 = sshll.u32 [#allocation5], 4
      %s32 = int_to_ptr.vmem [resolvable:$true] %s31
      %34 = dma.vmem_to_hbm [thread:$0]  %s32, 256, %s1, [#allocation4]
    $region13: #{tpu_custom_call.1} parent=1 // pred_fallthru
      _
    // Predicated region
    $region14: #{tpu_custom_call.1} parent=1 // pred_check
      _
    $region15: #{tpu_custom_call.1} parent=1 // pred_check_branch
      %36 = sbr.rel (0) target = $region17
    $region16: #{tpu_custom_call.1} parent=1 // pred_region
      %37 = dma.done [#allocation4], 256
    $region17: #{tpu_custom_call.1} parent=1 // pred_fallthru
      _
    %38 = vsyncpa [#allocation3], 1
    %39 = vsyncpa [#allocation4], 1

</llo_original>
